<compile_context>
chip_gen: v7x
topology: tpu7x:2x2x1
jax: 0.10.0
libtpu: 0.0.40
codegen_flags: <defaults>
</compile_context>

<pallas_src>
import functools
import math

import jax
import jax.numpy as jnp
from jax.experimental import pallas as pl
from jax.experimental.pallas import tpu as pltpu

_VMEM_LIMIT_BYTES = 48 * 1024 * 1024   # above the default scoped limit, safe on v5e/v6e/v7x


def _pick_tile(t, preferred):
    """Largest tile <= preferred that divides t (falls back to t itself)."""
    for cand in (preferred, 512, 256, 128, 64, 32, 16, 8):
        if cand <= t and t % cand == 0:
            return cand
    return t


def _qkv_proj_kernel(x_ref, wq_ref, wk_ref, wv_ref, q_ref, k_ref, v_ref, *,
                     num_heads, head_dim, inv_scale):
    # x_ref: (1, TQ, E); w*_ref: (E, C); outputs: (1, H, TQ, hd).
    x = x_ref[0]                                                         # (TQ, E), native dtype
    q = jnp.dot(x, wq_ref[...], preferred_element_type=jnp.float32) * inv_scale
    k = jnp.dot(x, wk_ref[...], preferred_element_type=jnp.float32)
    v = jnp.dot(x, wv_ref[...], preferred_element_type=jnp.float32)
    # Static per-head column slices (unrolled; H is a Python constant).
    for h in range(num_heads):
        sl = slice(h * head_dim, (h + 1) * head_dim)
        q_ref[0, h] = q[:, sl].astype(q_ref.dtype)
        k_ref[0, h] = k[:, sl].astype(k_ref.dtype)
        v_ref[0, h] = v[:, sl].astype(v_ref.dtype)


def _flash_attn_kernel(q_ref, k_ref, v_ref, wo_ref, bo_ref, o_ref,
                       m_sc, l_sc, acc_sc, oacc_sc, *, tq, tkv):
    # grid = (B, num_q_tiles, num_heads, num_kv_tiles)
    h = pl.program_id(2)
    ki = pl.program_id(3)
    q_start = pl.program_id(1) * tq
    k_start = ki * tkv

    @pl.when(ki == 0)
    def _init():
        m_sc[...] = jnp.full_like(m_sc, -jnp.inf)
        l_sc[...] = jnp.zeros_like(l_sc)
        acc_sc[...] = jnp.zeros_like(acc_sc)

    def _attend(apply_mask):
        q = q_ref[0, 0]                                                  # (TQ, hd), pre-scaled
        k = k_ref[0, 0]                                                  # (TKV, hd)
        s = jax.lax.dot_general(q, k, (((1,), (1,)), ((), ())),
                                preferred_element_type=jnp.float32)      # (TQ, TKV) f32
        if apply_mask:
            q_ids = q_start + jax.lax.broadcasted_iota(jnp.int32, (tq, tkv), 0)
            k_ids = k_start + jax.lax.broadcasted_iota(jnp.int32, (tq, tkv), 1)
            s = jnp.where(k_ids > q_ids, -jnp.inf, s)
        m_prev = m_sc[...]
        m_new = jnp.maximum(m_prev, jnp.max(s, axis=-1, keepdims=True))
        alpha = jnp.exp(m_prev - m_new)
        p = jnp.exp(s - m_new)
        l_sc[...] = alpha * l_sc[...] + jnp.sum(p, axis=-1, keepdims=True)
        acc_sc[...] = alpha * acc_sc[...] + jnp.dot(
            p.astype(v_ref.dtype), v_ref[0, 0], preferred_element_type=jnp.float32)
        m_sc[...] = m_new

    # KV tile entirely below the diagonal: visible, no masking cost.
    @pl.when(k_start + tkv <= q_start)
    def _below_diag():
        _attend(apply_mask=False)

    # KV tile straddling the diagonal: apply the causal mask.
    @pl.when(jnp.logical_and(k_start < q_start + tq, k_start + tkv > q_start))
    def _on_diag():
        _attend(apply_mask=True)

    # (tiles with k_start >= q_start + tq are fully masked: skipped, and their K/V DMA is
    #  avoided via a clamped index_map in the wrapper.)

    # After the last KV tile: normalize, project this head, accumulate across heads in f32,
    # and emit one lane-dense (TQ, C) store on the final head.
    @pl.when(ki == pl.num_programs(3) - 1)
    def _finalize():
        z = acc_sc[...] * pl.reciprocal(l_sc[...], approx=True)          # (TQ, hd) f32
        head_out = jnp.dot(z.astype(wo_ref.dtype), wo_ref[0],
                           preferred_element_type=jnp.float32)           # (TQ, C) f32

        @pl.when(h == 0)
        def _first_head():
            oacc_sc[...] = head_out + bo_ref[...].astype(jnp.float32)

        @pl.when(h > 0)
        def _other_heads():
            oacc_sc[...] = oacc_sc[...] + head_out

        @pl.when(h == pl.num_programs(2) - 1)
        def _store():
            o_ref[0] = oacc_sc[...].astype(o_ref.dtype)


def multi_head_attention(x, wq, wk, wv, wo, bo, *, num_heads, q_tile=256, kv_tile=256):
    """x: (B, T, E); wq/wk/wv: (E, C); wo: (C, C); bo: (C,). Returns (B, T, C).

    Weights follow y = x @ W (+ b), i.e. W = W_pytorch.T.
    """
    B, T, E = x.shape
    C = wq.shape[1]
    assert C % num_heads == 0
    hd = C // num_heads

    tq = _pick_tile(T, q_tile)
    tkv = _pick_tile(T, kv_tile)
    nq = T // tq
    nk = T // tkv

    # One-time (XLA-side) weight re-layouts; no in-kernel reshapes/transposes needed.
    wo_h = wo.reshape(num_heads, hd, C)                                  # (H, hd, C)
    bo2 = bo.reshape(1, C)

    # ---- Kernel 1: fused QKV projection into (B, H, T, hd), Q pre-scaled ---------------------
    qkv_kernel = functools.partial(_qkv_proj_kernel, num_heads=num_heads,
                                   head_dim=hd, inv_scale=1.0 / math.sqrt(hd))
    q, k, v = pl.pallas_call(
        qkv_kernel,
        out_shape=tuple(jax.ShapeDtypeStruct((B, num_heads, T, hd), x.dtype)
                        for _ in range(3)),
        grid_spec=pltpu.PrefetchScalarGridSpec(
            num_scalar_prefetch=0,
            grid=(B, nq),
            in_specs=[
                pl.BlockSpec((1, tq, E), lambda b, i: (b, i, 0)),
                pl.BlockSpec((E, C), lambda b, i: (0, 0)),
                pl.BlockSpec((E, C), lambda b, i: (0, 0)),
                pl.BlockSpec((E, C), lambda b, i: (0, 0)),
            ],
            out_specs=[
                pl.BlockSpec((1, num_heads, tq, hd), lambda b, i: (b, 0, i, 0)),
                pl.BlockSpec((1, num_heads, tq, hd), lambda b, i: (b, 0, i, 0)),
                pl.BlockSpec((1, num_heads, tq, hd), lambda b, i: (b, 0, i, 0)),
            ],
        ),
        compiler_params=pltpu.CompilerParams(
            dimension_semantics=("parallel", "parallel"),
            vmem_limit_bytes=_VMEM_LIMIT_BYTES),
    )(x, wq, wk, wv)

    # ---- Kernel 2: flash-style causal attention fused with the output projection -------------
    # Clamp the KV block index so fully-masked (future) KV tiles re-reference the previous block
    # and Pallas issues no DMA for them.
    def kv_index_map(b, qi, h, ki):
        last_useful = ((qi + 1) * tq - 1) // tkv
        return (b, h, jnp.minimum(ki, last_useful), 0)

    attn_kernel = functools.partial(_flash_attn_kernel, tq=tq, tkv=tkv)
    out = pl.pallas_call(
        attn_kernel,
        out_shape=jax.ShapeDtypeStruct((B, T, C), x.dtype),
        grid_spec=pltpu.PrefetchScalarGridSpec(
            num_scalar_prefetch=0,
            grid=(B, nq, num_heads, nk),
            in_specs=[
                pl.BlockSpec((1, 1, tq, hd), lambda b, qi, h, ki: (b, h, qi, 0)),
                pl.BlockSpec((1, 1, tkv, hd), kv_index_map),
                pl.BlockSpec((1, 1, tkv, hd), kv_index_map),
                pl.BlockSpec((1, hd, C), lambda b, qi, h, ki: (h, 0, 0)),
                pl.BlockSpec((1, C), lambda b, qi, h, ki: (0, 0)),
            ],
            out_specs=pl.BlockSpec((1, tq, C), lambda b, qi, h, ki: (b, qi, 0)),
            scratch_shapes=[
                pltpu.VMEM((tq, 1), jnp.float32),    # running max  m
                pltpu.VMEM((tq, 1), jnp.float32),    # running sum  l
                pltpu.VMEM((tq, hd), jnp.float32),   # per-head weighted-V accumulator
                pltpu.VMEM((tq, C), jnp.float32),    # cross-head output accumulator
            ],
        ),
        compiler_params=pltpu.CompilerParams(
            dimension_semantics=("parallel", "parallel", "arbitrary", "arbitrary"),
            vmem_limit_bytes=_VMEM_LIMIT_BYTES),
    )(q, k, v, wo_h, bo2)
    return out


def _reference(x, wq, wk, wv, wo, bo, num_heads):
    B, T, E = x.shape
    C = wq.shape[1]
    hd = C // num_heads
    q = (x @ wq).reshape(B, T, num_heads, hd).transpose(0, 2, 1, 3)
    k = (x @ wk).reshape(B, T, num_heads, hd).transpose(0, 2, 1, 3)
    v = (x @ wv).reshape(B, T, num_heads, hd).transpose(0, 2, 1, 3)
    s = jnp.einsum("bhqd,bhkd->bhqk", q, k)
    mask = jnp.triu(jnp.ones((T, T), bool), k=1)
    s = jnp.where(mask, -jnp.inf, s)
    w = jax.nn.softmax(s / math.sqrt(hd), axis=-1)
    z = jnp.einsum("bhqk,bhkd->bhqd", w, v).transpose(0, 2, 1, 3).reshape(B, T, C)
    return z @ wo + bo


if __name__ == "__main__":
    # Small shapes implied by the forward: (B, num_tokens, inp_emb_dim)
    B, T = 2, 8
    inp_emb_dim = 32
    context_dim = 32
    num_heads = 4

    key = jax.random.PRNGKey(0)
    kx, kq, kk, kv, ko, kb = jax.random.split(key, 6)

    x = jax.random.normal(kx, (B, T, inp_emb_dim), dtype=jnp.float32)
    # Deterministic parameter init (qkv_bias=False, proj_out has bias), uniform like nn.Linear.
    lim_in = 1.0 / math.sqrt(inp_emb_dim)
    lim_c = 1.0 / math.sqrt(context_dim)
    wq = jax.random.uniform(kq, (inp_emb_dim, context_dim), jnp.float32, -lim_in, lim_in)
    wk = jax.random.uniform(kk, (inp_emb_dim, context_dim), jnp.float32, -lim_in, lim_in)
    wv = jax.random.uniform(kv, (inp_emb_dim, context_dim), jnp.float32, -lim_in, lim_in)
    wo = jax.random.uniform(ko, (context_dim, context_dim), jnp.float32, -lim_c, lim_c)
    bo = jax.random.uniform(kb, (context_dim,), jnp.float32, -lim_c, lim_c)

    out = multi_head_attention(x, wq, wk, wv, wo, bo, num_heads=num_heads)
    out = jax.block_until_ready(out)

    ref = _reference(x, wq, wk, wv, wo, bo, num_heads)
    assert out.shape == (B, T, context_dim)
    # approx=True softmax reciprocal (EUP vrcp) -> slightly looser tolerance than exact f32 divide.
    assert jnp.allclose(out, ref, atol=1e-2, rtol=1e-2), "mismatch vs reference"

    # TODO(synk): kv-cache decode path (kv_cache_enabled=True) and training-mode dropout on the
    # attention weights are not implemented (module defaults: eval mode / cache disabled).
    print("KERNEL_OK")
</pallas_src>

<mosaic_0001>
module attributes {stable_mosaic.version = 11 : i64} {
  func.func @_qkv_proj_kernel(%arg0: i32, %arg1: i32, %arg2: memref<1x8x32xf32, #tpu.memory_space<vmem>>, %arg3: memref<32x32xf32, #tpu.memory_space<vmem>>, %arg4: memref<32x32xf32, #tpu.memory_space<vmem>>, %arg5: memref<32x32xf32, #tpu.memory_space<vmem>>, %arg6: memref<1x4x8x8xf32, #tpu.memory_space<vmem>>, %arg7: memref<1x4x8x8xf32, #tpu.memory_space<vmem>>, %arg8: memref<1x4x8x8xf32, #tpu.memory_space<vmem>>) attributes {dimension_semantics = [#tpu.dimension_semantics<parallel>, #tpu.dimension_semantics<parallel>], iteration_bounds = array<i64: 2, 1>, scalar_prefetch = 0 : i64, scratch_operands = 0 : i64, tpu.core_type = #tpu.core_type<tc>, window_params = [{transform_indices = @transform_0, window_bounds = array<i64: 1, 8, 32>}, {pipeline_mode = #tpu.pipeline_mode<synchronous>, transform_indices = @transform_1, window_bounds = array<i64: 32, 32>}, {pipeline_mode = #tpu.pipeline_mode<synchronous>, transform_indices = @transform_2, window_bounds = array<i64: 32, 32>}, {pipeline_mode = #tpu.pipeline_mode<synchronous>, transform_indices = @transform_3, window_bounds = array<i64: 32, 32>}, {transform_indices = @transform_4, window_bounds = array<i64: 1, 4, 8, 8>}, {transform_indices = @transform_5, window_bounds = array<i64: 1, 4, 8, 8>}, {transform_indices = @transform_6, window_bounds = array<i64: 1, 4, 8, 8>}]} {
    %c0 = arith.constant 0 : index
    %c0_0 = arith.constant 0 : index
    %c0_1 = arith.constant 0 : index
    %0 = vector.load %arg2[%c0, %c0_0, %c0_1] : memref<1x8x32xf32, #tpu.memory_space<vmem>>, vector<1x8x32xf32>
    %1 = vector.shape_cast %0 : vector<1x8x32xf32> to vector<8x32xf32>
    %c0_2 = arith.constant 0 : index
    %c0_3 = arith.constant 0 : index
    %2 = vector.load %arg3[%c0_2, %c0_3] : memref<32x32xf32, #tpu.memory_space<vmem>>, vector<32x32xf32>
    %cst = arith.constant dense<0.000000e+00> : vector<8x32xf32>
    %3 = tpu.matmul %1, %2, %cst {dimension_numbers = #tpu.dot_dimension_numbers<[1], [0], [0], [1], [0, 0, 1, 1], [], []>} : vector<8x32xf32>, vector<32x32xf32>, vector<8x32xf32> -> vector<8x32xf32>
    %cst_4 = arith.constant 0.353553385 : f32
    %4 = vector.broadcast %cst_4 : f32 to vector<8x32xf32>
    %5 = arith.mulf %3, %4 : vector<8x32xf32>
    %c0_5 = arith.constant 0 : index
    %c0_6 = arith.constant 0 : index
    %6 = vector.load %arg4[%c0_5, %c0_6] : memref<32x32xf32, #tpu.memory_space<vmem>>, vector<32x32xf32>
    %cst_7 = arith.constant dense<0.000000e+00> : vector<8x32xf32>
    %7 = tpu.matmul %1, %6, %cst_7 {dimension_numbers = #tpu.dot_dimension_numbers<[1], [0], [0], [1], [0, 0, 1, 1], [], []>} : vector<8x32xf32>, vector<32x32xf32>, vector<8x32xf32> -> vector<8x32xf32>
    %c0_8 = arith.constant 0 : index
    %c0_9 = arith.constant 0 : index
    %8 = vector.load %arg5[%c0_8, %c0_9] : memref<32x32xf32, #tpu.memory_space<vmem>>, vector<32x32xf32>
    %cst_10 = arith.constant dense<0.000000e+00> : vector<8x32xf32>
    %9 = tpu.matmul %1, %8, %cst_10 {dimension_numbers = #tpu.dot_dimension_numbers<[1], [0], [0], [1], [0, 0, 1, 1], [], []>} : vector<8x32xf32>, vector<32x32xf32>, vector<8x32xf32> -> vector<8x32xf32>
    %10 = vector.extract_strided_slice %5 {offsets = [0, 0], sizes = [8, 8], strides = [1, 1]} : vector<8x32xf32> to vector<8x8xf32>
    %c0_11 = arith.constant 0 : index
    %c0_12 = arith.constant 0 : index
    %c0_13 = arith.constant 0 : index
    %c0_14 = arith.constant 0 : index
    %11 = vector.load %arg6[%c0_11, %c0_12, %c0_13, %c0_14] : memref<1x4x8x8xf32, #tpu.memory_space<vmem>>, vector<1x1x8x8xf32>
    %12 = vector.shape_cast %11 : vector<1x1x8x8xf32> to vector<8x8xf32>
    %13 = vector.shape_cast %10 : vector<8x8xf32> to vector<1x1x8x8xf32>
    tpu.vector_store %arg6[%c0_11, %c0_12, %c0_13, %c0_14], %13 {strides = array<i32>} : memref<1x4x8x8xf32, #tpu.memory_space<vmem>>, vector<1x1x8x8xf32>,
    %14 = vector.extract_strided_slice %7 {offsets = [0, 0], sizes = [8, 8], strides = [1, 1]} : vector<8x32xf32> to vector<8x8xf32>
    %c0_15 = arith.constant 0 : index
    %c0_16 = arith.constant 0 : index
    %c0_17 = arith.constant 0 : index
    %c0_18 = arith.constant 0 : index
    %15 = vector.load %arg7[%c0_15, %c0_16, %c0_17, %c0_18] : memref<1x4x8x8xf32, #tpu.memory_space<vmem>>, vector<1x1x8x8xf32>
    %16 = vector.shape_cast %15 : vector<1x1x8x8xf32> to vector<8x8xf32>
    %17 = vector.shape_cast %14 : vector<8x8xf32> to vector<1x1x8x8xf32>
    tpu.vector_store %arg7[%c0_15, %c0_16, %c0_17, %c0_18], %17 {strides = array<i32>} : memref<1x4x8x8xf32, #tpu.memory_space<vmem>>, vector<1x1x8x8xf32>,
    %18 = vector.extract_strided_slice %9 {offsets = [0, 0], sizes = [8, 8], strides = [1, 1]} : vector<8x32xf32> to vector<8x8xf32>
    %c0_19 = arith.constant 0 : index
    %c0_20 = arith.constant 0 : index
    %c0_21 = arith.constant 0 : index
    %c0_22 = arith.constant 0 : index
    %19 = vector.load %arg8[%c0_19, %c0_20, %c0_21, %c0_22] : memref<1x4x8x8xf32, #tpu.memory_space<vmem>>, vector<1x1x8x8xf32>
    %20 = vector.shape_cast %19 : vector<1x1x8x8xf32> to vector<8x8xf32>
    %21 = vector.shape_cast %18 : vector<8x8xf32> to vector<1x1x8x8xf32>
    tpu.vector_store %arg8[%c0_19, %c0_20, %c0_21, %c0_22], %21 {strides = array<i32>} : memref<1x4x8x8xf32, #tpu.memory_space<vmem>>, vector<1x1x8x8xf32>,
    %22 = vector.extract_strided_slice %5 {offsets = [0, 8], sizes = [8, 8], strides = [1, 1]} : vector<8x32xf32> to vector<8x8xf32>
    %c0_23 = arith.constant 0 : index
    %c1 = arith.constant 1 : index
    %c0_24 = arith.constant 0 : index
    %c0_25 = arith.constant 0 : index
    %23 = vector.load %arg6[%c0_23, %c1, %c0_24, %c0_25] : memref<1x4x8x8xf32, #tpu.memory_space<vmem>>, vector<1x1x8x8xf32>
    %24 = vector.shape_cast %23 : vector<1x1x8x8xf32> to vector<8x8xf32>
    %25 = vector.shape_cast %22 : vector<8x8xf32> to vector<1x1x8x8xf32>
    tpu.vector_store %arg6[%c0_23, %c1, %c0_24, %c0_25], %25 {strides = array<i32>} : memref<1x4x8x8xf32, #tpu.memory_space<vmem>>, vector<1x1x8x8xf32>,
    %26 = vector.extract_strided_slice %7 {offsets = [0, 8], sizes = [8, 8], strides = [1, 1]} : vector<8x32xf32> to vector<8x8xf32>
    %c0_26 = arith.constant 0 : index
    %c1_27 = arith.constant 1 : index
    %c0_28 = arith.constant 0 : index
    %c0_29 = arith.constant 0 : index
    %27 = vector.load %arg7[%c0_26, %c1_27, %c0_28, %c0_29] : memref<1x4x8x8xf32, #tpu.memory_space<vmem>>, vector<1x1x8x8xf32>
    %28 = vector.shape_cast %27 : vector<1x1x8x8xf32> to vector<8x8xf32>
    %29 = vector.shape_cast %26 : vector<8x8xf32> to vector<1x1x8x8xf32>
    tpu.vector_store %arg7[%c0_26, %c1_27, %c0_28, %c0_29], %29 {strides = array<i32>} : memref<1x4x8x8xf32, #tpu.memory_space<vmem>>, vector<1x1x8x8xf32>,
    %30 = vector.extract_strided_slice %9 {offsets = [0, 8], sizes = [8, 8], strides = [1, 1]} : vector<8x32xf32> to vector<8x8xf32>
    %c0_30 = arith.constant 0 : index
    %c1_31 = arith.constant 1 : index
    %c0_32 = arith.constant 0 : index
    %c0_33 = arith.constant 0 : index
    %31 = vector.load %arg8[%c0_30, %c1_31, %c0_32, %c0_33] : memref<1x4x8x8xf32, #tpu.memory_space<vmem>>, vector<1x1x8x8xf32>
    %32 = vector.shape_cast %31 : vector<1x1x8x8xf32> to vector<8x8xf32>
    %33 = vector.shape_cast %30 : vector<8x8xf32> to vector<1x1x8x8xf32>
    tpu.vector_store %arg8[%c0_30, %c1_31, %c0_32, %c0_33], %33 {strides = array<i32>} : memref<1x4x8x8xf32, #tpu.memory_space<vmem>>, vector<1x1x8x8xf32>,
    %34 = vector.extract_strided_slice %5 {offsets = [0, 16], sizes = [8, 8], strides = [1, 1]} : vector<8x32xf32> to vector<8x8xf32>
    %c0_34 = arith.constant 0 : index
    %c2 = arith.constant 2 : index
    %c0_35 = arith.constant 0 : index
    %c0_36 = arith.constant 0 : index
    %35 = vector.load %arg6[%c0_34, %c2, %c0_35, %c0_36] : memref<1x4x8x8xf32, #tpu.memory_space<vmem>>, vector<1x1x8x8xf32>
    %36 = vector.shape_cast %35 : vector<1x1x8x8xf32> to vector<8x8xf32>
    %37 = vector.shape_cast %34 : vector<8x8xf32> to vector<1x1x8x8xf32>
    tpu.vector_store %arg6[%c0_34, %c2, %c0_35, %c0_36], %37 {strides = array<i32>} : memref<1x4x8x8xf32, #tpu.memory_space<vmem>>, vector<1x1x8x8xf32>,
    %38 = vector.extract_strided_slice %7 {offsets = [0, 16], sizes = [8, 8], strides = [1, 1]} : vector<8x32xf32> to vector<8x8xf32>
    %c0_37 = arith.constant 0 : index
    %c2_38 = arith.constant 2 : index
    %c0_39 = arith.constant 0 : index
    %c0_40 = arith.constant 0 : index
    %39 = vector.load %arg7[%c0_37, %c2_38, %c0_39, %c0_40] : memref<1x4x8x8xf32, #tpu.memory_space<vmem>>, vector<1x1x8x8xf32>
    %40 = vector.shape_cast %39 : vector<1x1x8x8xf32> to vector<8x8xf32>
    %41 = vector.shape_cast %38 : vector<8x8xf32> to vector<1x1x8x8xf32>
    tpu.vector_store %arg7[%c0_37, %c2_38, %c0_39, %c0_40], %41 {strides = array<i32>} : memref<1x4x8x8xf32, #tpu.memory_space<vmem>>, vector<1x1x8x8xf32>,
    %42 = vector.extract_strided_slice %9 {offsets = [0, 16], sizes = [8, 8], strides = [1, 1]} : vector<8x32xf32> to vector<8x8xf32>
    %c0_41 = arith.constant 0 : index
    %c2_42 = arith.constant 2 : index
    %c0_43 = arith.constant 0 : index
    %c0_44 = arith.constant 0 : index
    %43 = vector.load %arg8[%c0_41, %c2_42, %c0_43, %c0_44] : memref<1x4x8x8xf32, #tpu.memory_space<vmem>>, vector<1x1x8x8xf32>
    %44 = vector.shape_cast %43 : vector<1x1x8x8xf32> to vector<8x8xf32>
    %45 = vector.shape_cast %42 : vector<8x8xf32> to vector<1x1x8x8xf32>
    tpu.vector_store %arg8[%c0_41, %c2_42, %c0_43, %c0_44], %45 {strides = array<i32>} : memref<1x4x8x8xf32, #tpu.memory_space<vmem>>, vector<1x1x8x8xf32>,
    %46 = vector.extract_strided_slice %5 {offsets = [0, 24], sizes = [8, 8], strides = [1, 1]} : vector<8x32xf32> to vector<8x8xf32>
    %c0_45 = arith.constant 0 : index
    %c3 = arith.constant 3 : index
    %c0_46 = arith.constant 0 : index
    %c0_47 = arith.constant 0 : index
    %47 = vector.load %arg6[%c0_45, %c3, %c0_46, %c0_47] : memref<1x4x8x8xf32, #tpu.memory_space<vmem>>, vector<1x1x8x8xf32>
    %48 = vector.shape_cast %47 : vector<1x1x8x8xf32> to vector<8x8xf32>
    %49 = vector.shape_cast %46 : vector<8x8xf32> to vector<1x1x8x8xf32>
    tpu.vector_store %arg6[%c0_45, %c3, %c0_46, %c0_47], %49 {strides = array<i32>} : memref<1x4x8x8xf32, #tpu.memory_space<vmem>>, vector<1x1x8x8xf32>,
    %50 = vector.extract_strided_slice %7 {offsets = [0, 24], sizes = [8, 8], strides = [1, 1]} : vector<8x32xf32> to vector<8x8xf32>
    %c0_48 = arith.constant 0 : index
    %c3_49 = arith.constant 3 : index
    %c0_50 = arith.constant 0 : index
    %c0_51 = arith.constant 0 : index
    %51 = vector.load %arg7[%c0_48, %c3_49, %c0_50, %c0_51] : memref<1x4x8x8xf32, #tpu.memory_space<vmem>>, vector<1x1x8x8xf32>
    %52 = vector.shape_cast %51 : vector<1x1x8x8xf32> to vector<8x8xf32>
    %53 = vector.shape_cast %50 : vector<8x8xf32> to vector<1x1x8x8xf32>
    tpu.vector_store %arg7[%c0_48, %c3_49, %c0_50, %c0_51], %53 {strides = array<i32>} : memref<1x4x8x8xf32, #tpu.memory_space<vmem>>, vector<1x1x8x8xf32>,
    %54 = vector.extract_strided_slice %9 {offsets = [0, 24], sizes = [8, 8], strides = [1, 1]} : vector<8x32xf32> to vector<8x8xf32>
    %c0_52 = arith.constant 0 : index
    %c3_53 = arith.constant 3 : index
    %c0_54 = arith.constant 0 : index
    %c0_55 = arith.constant 0 : index
    %55 = vector.load %arg8[%c0_52, %c3_53, %c0_54, %c0_55] : memref<1x4x8x8xf32, #tpu.memory_space<vmem>>, vector<1x1x8x8xf32>
    %56 = vector.shape_cast %55 : vector<1x1x8x8xf32> to vector<8x8xf32>
    %57 = vector.shape_cast %54 : vector<8x8xf32> to vector<1x1x8x8xf32>
    tpu.vector_store %arg8[%c0_52, %c3_53, %c0_54, %c0_55], %57 {strides = array<i32>} : memref<1x4x8x8xf32, #tpu.memory_space<vmem>>, vector<1x1x8x8xf32>,
    return
  }
  func.func @transform_0(%arg0: i32, %arg1: i32) -> (i32, i32, i32) {
    %c0_i32 = arith.constant 0 : i32
    %c0_i32_0 = arith.constant 0 : i32
    return %arg0, %arg1, %c0_i32 : i32, i32, i32
  }
  func.func @transform_1(%arg0: i32, %arg1: i32) -> (i32, i32) {
    %c0_i32 = arith.constant 0 : i32
    %c0_i32_0 = arith.constant 0 : i32
    %c0_i32_1 = arith.constant 0 : i32
    return %c0_i32, %c0_i32_0 : i32, i32
  }
  func.func @transform_2(%arg0: i32, %arg1: i32) -> (i32, i32) {
    %c0_i32 = arith.constant 0 : i32
    %c0_i32_0 = arith.constant 0 : i32
    %c0_i32_1 = arith.constant 0 : i32
    return %c0_i32, %c0_i32_0 : i32, i32
  }
  func.func @transform_3(%arg0: i32, %arg1: i32) -> (i32, i32) {
    %c0_i32 = arith.constant 0 : i32
    %c0_i32_0 = arith.constant 0 : i32
    %c0_i32_1 = arith.constant 0 : i32
    return %c0_i32, %c0_i32_0 : i32, i32
  }
  func.func @transform_4(%arg0: i32, %arg1: i32) -> (i32, i32, i32, i32) {
    %c0_i32 = arith.constant 0 : i32
    %c0_i32_0 = arith.constant 0 : i32
    %c0_i32_1 = arith.constant 0 : i32
    return %arg0, %c0_i32, %arg1, %c0_i32_0 : i32, i32, i32, i32
  }
  func.func @transform_5(%arg0: i32, %arg1: i32) -> (i32, i32, i32, i32) {
    %c0_i32 = arith.constant 0 : i32
    %c0_i32_0 = arith.constant 0 : i32
    %c0_i32_1 = arith.constant 0 : i32
    return %arg0, %c0_i32, %arg1, %c0_i32_0 : i32, i32, i32, i32
  }
  func.func @transform_6(%arg0: i32, %arg1: i32) -> (i32, i32, i32, i32) {
    %c0_i32 = arith.constant 0 : i32
    %c0_i32_0 = arith.constant 0 : i32
    %c0_i32_1 = arith.constant 0 : i32
    return %arg0, %c0_i32, %arg1, %c0_i32_0 : i32, i32, i32, i32
  }
}

</mosaic_0001>

<llo_original>
// kernel: tpu_custom_call.1
$region0: #{tpu_custom_call.1}
  #allocation0 [shape = 'u32[]', space=smem, size = 0x4, offset = 0x4, fixed_abs, tag = 'smem constant byte address 0x4 - core index']
  #allocation1 [shape = 'u32[144,128]{1,0:T(1,128)}', space=vmem, size = 0x12000, scoped, tag = 'internal scratch']
  %s0 = inlined_call_operand.hbm [shape: f32[2,8,32], index: 0, kind: input, shape index: {}]
  %s1 = inlined_call_operand.hbm [shape: f32[32,32], index: 1, kind: input, shape index: {}]
  %s2 = inlined_call_operand.hbm [shape: f32[32,32], index: 2, kind: input, shape index: {}]
  %s3 = inlined_call_operand.hbm [shape: f32[32,32], index: 3, kind: input, shape index: {}]
  %s4 = inlined_call_operand.hbm [shape: f32[2,4,8,8], index: 4, kind: output, shape index: {0}]
  %s5 = inlined_call_operand.hbm [shape: f32[2,4,8,8], index: 5, kind: output, shape index: {1}]
  %s6 = inlined_call_operand.hbm [shape: f32[2,4,8,8], index: 6, kind: output, shape index: {2}]
  %7 = xla_tuple %s4, %s5, %s6
  %s8 = sld [smem:[#allocation0]]
  $region81: #{tpu_custom_call.1} parent=0
    _
  %s10 = ssub.s32 1, %s8
  %s11 = scalar_select 0, %s10, %s8
  $region1: #{tpu_custom_call.1} parent=0
    #allocation2 [shape = 'u8[8192]{0}', space=vmem, size = 0x2000, scoped, tag = 'input window, operand 0']
    #allocation3 [shape = 's32[2]{0}', space=sflag, size = 0x8, scoped, tag = 'scoped memory for tpu_custom_call.1']
    #allocation4 [shape = 's32[2]{0}', space=sflag, size = 0x8, scoped, tag = 'scoped memory for tpu_custom_call.1']
    #allocation5 [shape = 'u8[16384]{0}', space=vmem, size = 0x4000, scoped, tag = 'input window, operand 1, single buffered']
    #allocation6 [shape = 's32[1]{0}', space=sflag, size = 0x4, scoped, tag = 'scoped memory for tpu_custom_call.1']
    #allocation7 [shape = 'u8[16384]{0}', space=vmem, size = 0x4000, scoped, tag = 'input window, operand 2, single buffered']
    #allocation8 [shape = 'u8[16384]{0}', space=vmem, size = 0x4000, scoped, tag = 'input window, operand 3, single buffered']
    #allocation9 [shape = 's32[1]{0}', space=sflag, size = 0x4, scoped, tag = 'scoped memory for tpu_custom_call.1']
    #allocation10 [shape = 'u8[32768]{0}', space=vmem, size = 0x8000, scoped, tag = 'output window, operand 0']
    #allocation11 [shape = 'u8[32768]{0}', space=vmem, size = 0x8000, scoped, tag = 'output window, operand 1']
    #allocation12 [shape = 's32[2]{0}', space=sflag, size = 0x8, scoped, tag = 'scoped memory for tpu_custom_call.1']
    #allocation13 [shape = 'u8[32768]{0}', space=vmem, size = 0x8000, scoped, tag = 'output window, operand 2']
    %12 = vsyncpa [#allocation3], 0
    %s13 = scalar_lea.sflag [#allocation3], 1
    %14 = vsyncpa %s13, 0
    %15 = vsyncpa [#allocation6], 0
    %16 = vsyncpa [#allocation9], 0
    %17 = vsyncpa [#allocation4], 0
    %s18 = scalar_lea.sflag [#allocation4], 1
    %19 = vsyncpa %s18, 0
    %20 = vsyncpa [#allocation12], 0
    %s21 = scalar_lea.sflag [#allocation12], 1
    %22 = vsyncpa %s21, 0
    loop: start=0, step=1, limit=4
    $region2: #{tpu_custom_call.1} parent=1 // loop_pre_header
      _
    $region3: #{tpu_custom_call.1} parent=1 // loop_header
      %s24 = sphi 0, %s28
      %p25 = scmp.ge.s32.totalorder %s24, 4
      %s31 = sphi 0, %s43
      %s32 = sphi 0, %s39
      %s33 = sphi 0, %s31
      %s34 = sphi 0, %s32
      %s35 = sphi 0, %s33
      %s36 = sphi 0, %s34
      %s48 = sphi 0, %s50
      %s51 = sphi 0, %s48
      %s52 = sphi 0, %s51
      %s68 = sphi 0, %s52
      %s72 = sphi 0, %s72
      %s74 = sphi 0, %s72
      %s75 = sphi 0, %s74
      %s89 = sphi 0, %s75
      %s93 = sphi 0, %s93
      %s95 = sphi 0, %s93
      %s96 = sphi 0, %s95
      %s110 = sphi 0, %s96
      %s114 = sphi 0, %s114
      %s116 = sphi 0, %s114
      %s117 = sphi 0, %s116
      %s131 = sphi 0, %s117
      %s139 = sphi 0, %s141
      %s142 = sphi 0, %s139
      %s143 = sphi 0, %s142
      %s159 = sphi 0, %s143
      %s167 = sphi 0, %s169
      %s170 = sphi 0, %s167
      %s171 = sphi 0, %s170
      %s187 = sphi 0, %s171
      %s195 = sphi 0, %s197
      %s198 = sphi 0, %s195
      %s199 = sphi 0, %s198
      %s215 = sphi 0, %s199
    $region4: #{tpu_custom_call.1} parent=1 // loop_header_branch
      %27 = sbr.rel (%p25) target = $region8
    $region5: #{tpu_custom_call.1} parent=1 // loop_body
      %s29 = ssub.s32 %s24, 1
      %s30 = ssub.s32 %s24, 2
      %s37 = sadd.s32 1, %s32
      %p38 = scmp.ge.s32.totalorder %s37, 1
      %s39 = scalar_select %p38, 0, %s37
      %s40 = sadd.s32 1, %s31
      %s41 = scalar_select %p38, %s40, %s31
      %p42 = scmp.ge.s32.totalorder %s41, 2
      %s43 = scalar_select %p42, 0, %s41
      %s44 = ssub.s32 %s31, %s43
      %s45 = ssub.s32 %s32, %s39
      %s46 = sor.u32 %s44, %s45
      %p47 = scmp.eq.s32.totalorder %s46, 0
      %s49 = sadd.s32 %s48, 1
      %s50 = scalar_select %p47, %s48, %s49
      %p53 = pneg %p47
      %p54 = scmp.eq.s32.totalorder %s24, 1
      %p55 = por %p53, %p54
      %p56 = scmp.ne.s32.totalorder %s48, %s51
      %p57 = scmp.eq.s32.totalorder %s24, 0
      %p58 = por %p56, %p57
      %p59 = scmp.ne.s32.totalorder %s48, %s51
      %p60 = scmp.eq.s32.totalorder %s29, 1
      %p61 = por %p59, %p60
      %p62 = scmp.ne.s32.totalorder %s51, %s52
      %p63 = scmp.eq.s32.totalorder %s29, 0
      %p64 = por %p62, %p63
      %p65 = scmp.ne.s32.totalorder %s51, %s52
      %p66 = scmp.eq.s32.totalorder %s30, 1
      %p67 = por %p65, %p66
      %p69 = scmp.ne.s32.totalorder %s52, %s68
      %p70 = scmp.eq.s32.totalorder %s30, 0
      %p71 = por %p69, %p70
      %s73 = sadd.s32 %s72, 1
      %p76 = scmp.eq.s32.totalorder %s24, 1
      %p77 = scmp.ne.s32.totalorder %s72, %s74
      %p78 = scmp.eq.s32.totalorder %s24, 0
      %p79 = por %p77, %p78
      %p80 = scmp.ne.s32.totalorder %s72, %s74
      %p81 = scmp.eq.s32.totalorder %s29, 1
      %p82 = por %p80, %p81
      %p83 = scmp.ne.s32.totalorder %s74, %s75
      %p84 = scmp.eq.s32.totalorder %s29, 0
      %p85 = por %p83, %p84
      %p86 = scmp.ne.s32.totalorder %s74, %s75
      %p87 = scmp.eq.s32.totalorder %s30, 1
      %p88 = por %p86, %p87
      %p90 = scmp.ne.s32.totalorder %s75, %s89
      %p91 = scmp.eq.s32.totalorder %s30, 0
      %p92 = por %p90, %p91
      %s94 = sadd.s32 %s93, 1
      %p97 = scmp.eq.s32.totalorder %s24, 1
      %p98 = scmp.ne.s32.totalorder %s93, %s95
      %p99 = scmp.eq.s32.totalorder %s24, 0
      %p100 = por %p98, %p99
      %p101 = scmp.ne.s32.totalorder %s93, %s95
      %p102 = scmp.eq.s32.totalorder %s29, 1
      %p103 = por %p101, %p102
      %p104 = scmp.ne.s32.totalorder %s95, %s96
      %p105 = scmp.eq.s32.totalorder %s29, 0
      %p106 = por %p104, %p105
      %p107 = scmp.ne.s32.totalorder %s95, %s96
      %p108 = scmp.eq.s32.totalorder %s30, 1
      %p109 = por %p107, %p108
      %p111 = scmp.ne.s32.totalorder %s96, %s110
      %p112 = scmp.eq.s32.totalorder %s30, 0
      %p113 = por %p111, %p112
      %s115 = sadd.s32 %s114, 1
      %p118 = scmp.eq.s32.totalorder %s24, 1
      %p119 = scmp.ne.s32.totalorder %s114, %s116
      %p120 = scmp.eq.s32.totalorder %s24, 0
      %p121 = por %p119, %p120
      %p122 = scmp.ne.s32.totalorder %s114, %s116
      %p123 = scmp.eq.s32.totalorder %s29, 1
      %p124 = por %p122, %p123
      %p125 = scmp.ne.s32.totalorder %s116, %s117
      %p126 = scmp.eq.s32.totalorder %s29, 0
      %p127 = por %p125, %p126
      %p128 = scmp.ne.s32.totalorder %s116, %s117
      %p129 = scmp.eq.s32.totalorder %s30, 1
      %p130 = por %p128, %p129
      %p132 = scmp.ne.s32.totalorder %s117, %s131
      %p133 = scmp.eq.s32.totalorder %s30, 0
      %p134 = por %p132, %p133
      %s135 = ssub.s32 %s31, %s43
      %s136 = ssub.s32 %s32, %s39
      %s137 = sor.u32 %s135, %s136
      %p138 = scmp.eq.s32.totalorder %s137, 0
      %s140 = sadd.s32 %s139, 1
      %s141 = scalar_select %p138, %s139, %s140
      %p144 = pneg %p138
      %p145 = scmp.eq.s32.totalorder %s24, 1
      %p146 = por %p144, %p145
      %p147 = scmp.ne.s32.totalorder %s139, %s142
      %p148 = scmp.eq.s32.totalorder %s24, 0
      %p149 = por %p147, %p148
      %p150 = scmp.ne.s32.totalorder %s139, %s142
      %p151 = scmp.eq.s32.totalorder %s29, 1
      %p152 = por %p150, %p151
      %p153 = scmp.ne.s32.totalorder %s142, %s143
      %p154 = scmp.eq.s32.totalorder %s29, 0
      %p155 = por %p153, %p154
      %p156 = scmp.ne.s32.totalorder %s142, %s143
      %p157 = scmp.eq.s32.totalorder %s30, 1
      %p158 = por %p156, %p157
      %p160 = scmp.ne.s32.totalorder %s143, %s159
      %p161 = scmp.eq.s32.totalorder %s30, 0
      %p162 = por %p160, %p161
      %s163 = ssub.s32 %s31, %s43
      %s164 = ssub.s32 %s32, %s39
      %s165 = sor.u32 %s163, %s164
      %p166 = scmp.eq.s32.totalorder %s165, 0
      %s168 = sadd.s32 %s167, 1
      %s169 = scalar_select %p166, %s167, %s168
      %p172 = pneg %p166
      %p173 = scmp.eq.s32.totalorder %s24, 1
      %p174 = por %p172, %p173
      %p175 = scmp.ne.s32.totalorder %s167, %s170
      %p176 = scmp.eq.s32.totalorder %s24, 0
      %p177 = por %p175, %p176
      %p178 = scmp.ne.s32.totalorder %s167, %s170
      %p179 = scmp.eq.s32.totalorder %s29, 1
      %p180 = por %p178, %p179
      %p181 = scmp.ne.s32.totalorder %s170, %s171
      %p182 = scmp.eq.s32.totalorder %s29, 0
      %p183 = por %p181, %p182
      %p184 = scmp.ne.s32.totalorder %s170, %s171
      %p185 = scmp.eq.s32.totalorder %s30, 1
      %p186 = por %p184, %p185
      %p188 = scmp.ne.s32.totalorder %s171, %s187
      %p189 = scmp.eq.s32.totalorder %s30, 0
      %p190 = por %p188, %p189
      %s191 = ssub.s32 %s31, %s43
      %s192 = ssub.s32 %s32, %s39
      %s193 = sor.u32 %s191, %s192
      %p194 = scmp.eq.s32.totalorder %s193, 0
      %s196 = sadd.s32 %s195, 1
      %s197 = scalar_select %p194, %s195, %s196
      %p200 = pneg %p194
      %p201 = scmp.eq.s32.totalorder %s24, 1
      %p202 = por %p200, %p201
      %p203 = scmp.ne.s32.totalorder %s195, %s198
      %p204 = scmp.eq.s32.totalorder %s24, 0
      %p205 = por %p203, %p204
      %p206 = scmp.ne.s32.totalorder %s195, %s198
      %p207 = scmp.eq.s32.totalorder %s29, 1
      %p208 = por %p206, %p207
      %p209 = scmp.ne.s32.totalorder %s198, %s199
      %p210 = scmp.eq.s32.totalorder %s29, 0
      %p211 = por %p209, %p210
      %p212 = scmp.ne.s32.totalorder %s198, %s199
      %p213 = scmp.eq.s32.totalorder %s30, 1
      %p214 = por %p212, %p213
      %p216 = scmp.ne.s32.totalorder %s199, %s215
      %p217 = scmp.eq.s32.totalorder %s30, 0
      %p218 = por %p216, %p217
      %p219 = scmp.le.s32.totalorder 1, %s24
      %p220 = scmp.lt.s32.totalorder %s24, 3
      %p221 = pnand %p219, %p220
      %p222 = pneg %p221
      // Predicated region
      $region9: #{tpu_custom_call.1} parent=5 // pred_check
        _
      $region10: #{tpu_custom_call.1} parent=5 // pred_check_branch
        %224 = sbr.rel (%p221) target = $region12
      $region11: #{tpu_custom_call.1} parent=5 // pred_region
        %s225 = ssub.s32 %s24, 1
        // Predicated region
        $region13: #{tpu_custom_call.1} parent=11 // pred_check
          %p226 = pneg %p85
        $region14: #{tpu_custom_call.1} parent=11 // pred_check_branch
          %228 = sbr.rel (%p226) target = $region16
        $region15: #{tpu_custom_call.1} parent=11 // pred_region
          %s230 = ssub.s32 512, 512
          %231 = vsyncadd [#allocation6], %s230
          %s232 = sshll.u32 [#allocation5], 4
          %s233 = int_to_ptr.vmem [resolvable:$true] %s232
          %238 = dma.hbm_to_vmem [thread:$0]  %s1, 512, %s233, [#allocation6], 128, 128, 8
        $region16: #{tpu_custom_call.1} parent=11 // pred_fallthru
          _
        // Predicated region
        $region17: #{tpu_custom_call.1} parent=11 // pred_check
          %p239 = pneg %p106
        $region18: #{tpu_custom_call.1} parent=11 // pred_check_branch
          %241 = sbr.rel (%p239) target = $region20
        $region19: #{tpu_custom_call.1} parent=11 // pred_region
          %s243 = ssub.s32 512, 512
          %244 = vsyncadd [#allocation6], %s243
          %s245 = sshll.u32 [#allocation7], 4
          %s246 = int_to_ptr.vmem [resolvable:$true] %s245
          %251 = dma.hbm_to_vmem [thread:$0]  %s2, 512, %s246, [#allocation6], 128, 128, 8
        $region20: #{tpu_custom_call.1} parent=11 // pred_fallthru
          _
        // Predicated region
        $region21: #{tpu_custom_call.1} parent=11 // pred_check
          %p252 = pneg %p127
        $region22: #{tpu_custom_call.1} parent=11 // pred_check_branch
          %254 = sbr.rel (%p252) target = $region24
        $region23: #{tpu_custom_call.1} parent=11 // pred_region
          %s256 = ssub.s32 512, 512
          %257 = vsyncadd [#allocation9], %s256
          %s258 = sshll.u32 [#allocation8], 4
          %s259 = int_to_ptr.vmem [resolvable:$true] %s258
          %264 = dma.hbm_to_vmem [thread:$0]  %s3, 512, %s259, [#allocation9], 128, 128, 8
        $region24: #{tpu_custom_call.1} parent=11 // pred_fallthru
          _
      $region12: #{tpu_custom_call.1} parent=5 // pred_fallthru
        _
      %p265 = scmp.lt.s32.totalorder %s24, 2
      // Predicated region
      $region25: #{tpu_custom_call.1} parent=5 // pred_check
        %p266 = pneg %p265
      $region26: #{tpu_custom_call.1} parent=5 // pred_check_branch
        %268 = sbr.rel (%p266) target = $region28
      $region27: #{tpu_custom_call.1} parent=5 // pred_region
        // Predicated region
        $region29: #{tpu_custom_call.1} parent=27 // pred_check
          %p269 = pneg %p58
        $region30: #{tpu_custom_call.1} parent=27 // pred_check_branch
          %271 = sbr.rel (%p269) target = $region32
        $region31: #{tpu_custom_call.1} parent=27 // pred_region
          %s272 = sand.u32 %s48, 1
          %s273 = scalar_lea.sflag [#allocation3], %s272
          %s274 = sand.u32 %s48, 1
          %s275 = smul.addr %s274, 8
          %s276 = scalar_lea.vmem [#allocation2], %s275
          %s278 = ssub.s32 128, 128
          %279 = vsyncadd %s273, %s278
          %s280 = sadd.s32 %s32, %s31
          %s281 = smul.addr %s280, 128
          %s282 = scalar_lea.hbm %s0, %s281
          %s284 = sshll.u32 %s276, 4
          %s285 = int_to_ptr.vmem [resolvable:$true] %s284
          %287 = dma.hbm_to_vmem [thread:$0]  %s282, 128, %s285, %s273
        $region32: #{tpu_custom_call.1} parent=27 // pred_fallthru
          _
      $region28: #{tpu_custom_call.1} parent=5 // pred_fallthru
        _
      %p288 = scmp.le.s32.totalorder 1, %s24
      %p289 = scmp.lt.s32.totalorder %s24, 3
      %p290 = pnand %p288, %p289
      %p291 = pneg %p290
      // Predicated region
      $region33: #{tpu_custom_call.1} parent=5 // pred_check
        _
      $region34: #{tpu_custom_call.1} parent=5 // pred_check_branch
        %293 = sbr.rel (%p290) target = $region36
      $region35: #{tpu_custom_call.1} parent=5 // pred_region
        %s294 = ssub.s32 %s24, 1
        %s295 = sand.u32 %s51, 1
        %s296 = scalar_lea.sflag [#allocation3], %s295
        %s297 = sand.u32 %s51, 1
        %s298 = smul.addr %s297, 8
        %s299 = scalar_lea.vmem [#allocation2], %s298
        // Predicated region
        $region37: #{tpu_custom_call.1} parent=35 // pred_check
          %p300 = pneg %p64
        $region38: #{tpu_custom_call.1} parent=35 // pred_check_branch
          %302 = sbr.rel (%p300) target = $region40
        $region39: #{tpu_custom_call.1} parent=35 // pred_region
          %303 = dma.done %s296, 128
        $region40: #{tpu_custom_call.1} parent=35 // pred_fallthru
          _
        // Predicated region
        $region41: #{tpu_custom_call.1} parent=35 // pred_check
          %p304 = pneg %p85
        $region42: #{tpu_custom_call.1} parent=35 // pred_check_branch
          %306 = sbr.rel (%p304) target = $region44
        $region43: #{tpu_custom_call.1} parent=35 // pred_region
          %307 = dma.done [#allocation6], 512
        $region44: #{tpu_custom_call.1} parent=35 // pred_fallthru
          _
        // Predicated region
        $region45: #{tpu_custom_call.1} parent=35 // pred_check
          %p308 = pneg %p106
        $region46: #{tpu_custom_call.1} parent=35 // pred_check_branch
          %310 = sbr.rel (%p308) target = $region48
        $region47: #{tpu_custom_call.1} parent=35 // pred_region
          %311 = dma.done [#allocation6], 512
        $region48: #{tpu_custom_call.1} parent=35 // pred_fallthru
          _
        // Predicated region
        $region49: #{tpu_custom_call.1} parent=35 // pred_check
          %p312 = pneg %p127
        $region50: #{tpu_custom_call.1} parent=35 // pred_check_branch
          %314 = sbr.rel (%p312) target = $region52
        $region51: #{tpu_custom_call.1} parent=35 // pred_region
          %315 = dma.done [#allocation9], 512
        $region52: #{tpu_custom_call.1} parent=35 // pred_fallthru
          _
        %s316 = sand.u32 %s51, 1
        %s317 = scalar_lea.sflag [#allocation3], %s316
        %s318 = sand.u32 %s51, 1
        %s319 = smul.addr %s318, 8
        %s320 = scalar_lea.vmem [#allocation2], %s319
        %p321 = pneg %p64
        %p322 = pneg %p61
        %p323 = pneg %p85
        %p324 = pneg %p82
        %p325 = pneg %p106
        %p326 = pneg %p103
        %p327 = pneg %p127
        %p328 = pneg %p124
        %p329 = pneg %p155
        %p330 = pneg %p152
        %s331 = sand.u32 %s142, 1
        %s332 = scalar_lea.sflag [#allocation4], %s331
        %s333 = sand.u32 %s142, 1
        %s334 = smul.addr %s333, 32
        %s335 = scalar_lea.vmem [#allocation10], %s334
        %p336 = pneg %p183
        %p337 = pneg %p180
        %s338 = sand.u32 %s29, 1
        %s339 = scalar_lea.sflag [#allocation12], %s338
        %s340 = sand.u32 %s170, 1
        %s341 = smul.addr %s340, 32
        %s342 = scalar_lea.vmem [#allocation11], %s341
        %p343 = pneg %p211
        %p344 = pneg %p208
        %s345 = sand.u32 %s29, 1
        %s346 = scalar_lea.sflag [#allocation12], %s345
        %s347 = sand.u32 %s198, 1
        %s348 = smul.addr %s347, 32
        %s349 = scalar_lea.vmem [#allocation13], %s348
        %v350 = vld [vmem:[%s299] sm:$0xff]
        %v351 = vld [vmem:[#allocation5] sm:$0xff]
        %v352 = vld [vmem:[#allocation5 + $0x8] sm:$0xff]
        %v353 = vld [vmem:[#allocation5 + $0x10] sm:$0xff]
        %v354 = vld [vmem:[#allocation5 + $0x18] sm:$0xff]
        %vm355 = vcmask 261120
        %v357 = vsel %vm355, %v350, 0
        %359 = vmatprep.subr.mxu0 0.0
        %360 = vmatpush1.msra.mxu0 %v351
        %361 = vmatprep.subr.mxu0 0.0
        %362 = vmatpush1.msra.mxu0 %v352
        %363 = vmatprep.subr.mxu0 0.0
        %364 = vmatpush1.msra.mxu0 %v353
        %365 = vmatprep.subr.mxu0 0.0
        %366 = vmatpush1.msra.mxu0 %v354
        %367 = vmatprep.subr.mxu0 0.0
        %368 = vmatpush1.msra.mxu0 0.0
        %369 = vmatprep.subr.mxu0 0.0
        %370 = vmatpush1.msra.mxu0 0.0
        %371 = vmatprep.subr.mxu0 0.0
        %372 = vmatpush1.msra.mxu0 0.0
        %373 = vmatprep.subr.mxu0 0.0
        %374 = vmatpush1.msra.mxu0 0.0
        %375 = vmatprep.subr.mxu0 0.0
        %376 = vmatpush1.msra.mxu0 0.0
        %377 = vmatprep.subr.mxu0 0.0
        %378 = vmatpush1.msra.mxu0 0.0
        %379 = vmatprep.subr.mxu0 0.0
        %380 = vmatpush1.msra.mxu0 0.0
        %381 = vmatprep.subr.mxu0 0.0
        %382 = vmatpush1.msra.mxu0 0.0
        %383 = vmatprep.subr.mxu0 0.0
        %384 = vmatpush1.msra.mxu0 0.0
        %385 = vmatprep.subr.mxu0 0.0
        %386 = vmatpush1.msra.mxu0 0.0
        %387 = vmatprep.subr.mxu0 0.0
        %388 = vmatpush1.msra.mxu0 0.0
        %389 = vmatprep.subr.mxu0 0.0
        %390 = vmatpush1.msra.mxu0 0.0
        %391 = vmatprep.subr.mxu0 0.0
        %392 = vmatpush1.msra.mxu0 0.0
        %393 = vmatprep.subr.mxu0 0.0
        %394 = vmatpush1.msra.mxu0 0.0
        %395 = vmatprep.subr.mxu0 0.0
        %396 = vmatpush1.msra.mxu0 0.0
        %397 = vmatprep.subr.mxu0 0.0
        %398 = vmatpush1.msra.mxu0 0.0
        %399 = vmatprep.subr.mxu0 0.0
        %400 = vmatpush1.msra.mxu0 0.0
        %401 = vmatprep.subr.mxu0 0.0
        %402 = vmatpush1.msra.mxu0 0.0
        %403 = vmatprep.subr.mxu0 0.0
        %404 = vmatpush1.msra.mxu0 0.0
        %405 = vmatprep.subr.mxu0 0.0
        %406 = vmatpush1.msra.mxu0 0.0
        %407 = vmatprep.subr.mxu0 0.0
        %408 = vmatpush1.msra.mxu0 0.0
        %409 = vmatprep.subr.mxu0 0.0
        %410 = vmatpush1.msra.mxu0 0.0
        %411 = vmatprep.subr.mxu0 0.0
        %412 = vmatpush1.msra.mxu0 0.0
        %413 = vmatprep.subr.mxu0 0.0
        %414 = vmatpush1.msra.mxu0 0.0
        %415 = vmatprep.subr.mxu0 0.0
        %416 = vmatpush1.msra.mxu0 0.0
        %417 = vmatprep.subr.mxu0 0.0
        %418 = vmatpush1.msra.mxu0 0.0
        %419 = vmatprep.subr.mxu0 0.0
        %420 = vmatpush1.msra.mxu0 0.0
        %421 = vmatprep.subr.mxu0 0.0
        %422 = vmatpush1.msra.mxu0 0.0
        %423 = vmatprep.mubr.f32.mxu0 0.0
        %424 = vmatmul.mubr.f32.gmra.mrb[0].mxu0 %v357
        %v425 = vpop.f32.mrb[0].mxu0
        %v426 = vadd.f32 0.0, %v425
        %v427 = vpop.f32.mrb[0].mxu0
        %428 = vdwg.mxu0
        %v429 = vmul.f32 %v426, 0.35355338
        %v430 = vld [vmem:[#allocation7] sm:$0xff]
        %v431 = vld [vmem:[#allocation7 + $0x8] sm:$0xff]
        %v432 = vld [vmem:[#allocation7 + $0x10] sm:$0xff]
        %v433 = vld [vmem:[#allocation7 + $0x18] sm:$0xff]
        %434 = vmatprep.subr.mxu0 0.0
        %435 = vmatpush1.msra.mxu0 %v430
        %436 = vmatprep.subr.mxu0 0.0
        %437 = vmatpush1.msra.mxu0 %v431
        %438 = vmatprep.subr.mxu0 0.0
        %439 = vmatpush1.msra.mxu0 %v432
        %440 = vmatprep.subr.mxu0 0.0
        %441 = vmatpush1.msra.mxu0 %v433
        %442 = vmatprep.subr.mxu0 0.0
        %443 = vmatpush1.msra.mxu0 0.0
        %444 = vmatprep.subr.mxu0 0.0
        %445 = vmatpush1.msra.mxu0 0.0
        %446 = vmatprep.subr.mxu0 0.0
        %447 = vmatpush1.msra.mxu0 0.0
        %448 = vmatprep.subr.mxu0 0.0
        %449 = vmatpush1.msra.mxu0 0.0
        %450 = vmatprep.subr.mxu0 0.0
        %451 = vmatpush1.msra.mxu0 0.0
        %452 = vmatprep.subr.mxu0 0.0
        %453 = vmatpush1.msra.mxu0 0.0
        %454 = vmatprep.subr.mxu0 0.0
        %455 = vmatpush1.msra.mxu0 0.0
        %456 = vmatprep.subr.mxu0 0.0
        %457 = vmatpush1.msra.mxu0 0.0
        %458 = vmatprep.subr.mxu0 0.0
        %459 = vmatpush1.msra.mxu0 0.0
        %460 = vmatprep.subr.mxu0 0.0
        %461 = vmatpush1.msra.mxu0 0.0
        %462 = vmatprep.subr.mxu0 0.0
        %463 = vmatpush1.msra.mxu0 0.0
        %464 = vmatprep.subr.mxu0 0.0
        %465 = vmatpush1.msra.mxu0 0.0
        %466 = vmatprep.subr.mxu0 0.0
        %467 = vmatpush1.msra.mxu0 0.0
        %468 = vmatprep.subr.mxu0 0.0
        %469 = vmatpush1.msra.mxu0 0.0
        %470 = vmatprep.subr.mxu0 0.0
        %471 = vmatpush1.msra.mxu0 0.0
        %472 = vmatprep.subr.mxu0 0.0
        %473 = vmatpush1.msra.mxu0 0.0
        %474 = vmatprep.subr.mxu0 0.0
        %475 = vmatpush1.msra.mxu0 0.0
        %476 = vmatprep.subr.mxu0 0.0
        %477 = vmatpush1.msra.mxu0 0.0
        %478 = vmatprep.subr.mxu0 0.0
        %479 = vmatpush1.msra.mxu0 0.0
        %480 = vmatprep.subr.mxu0 0.0
        %481 = vmatpush1.msra.mxu0 0.0
        %482 = vmatprep.subr.mxu0 0.0
        %483 = vmatpush1.msra.mxu0 0.0
        %484 = vmatprep.subr.mxu0 0.0
        %485 = vmatpush1.msra.mxu0 0.0
        %486 = vmatprep.subr.mxu0 0.0
        %487 = vmatpush1.msra.mxu0 0.0
        %488 = vmatprep.subr.mxu0 0.0
        %489 = vmatpush1.msra.mxu0 0.0
        %490 = vmatprep.subr.mxu0 0.0
        %491 = vmatpush1.msra.mxu0 0.0
        %492 = vmatprep.subr.mxu0 0.0
        %493 = vmatpush1.msra.mxu0 0.0
        %494 = vmatprep.subr.mxu0 0.0
        %495 = vmatpush1.msra.mxu0 0.0
        %496 = vmatprep.subr.mxu0 0.0
        %497 = vmatpush1.msra.mxu0 0.0
        %498 = vmatprep.mubr.f32.mxu0 0.0
        %499 = vmatmul.mubr.f32.gmra.mrb[0].mxu0 %v357
        %v500 = vpop.f32.mrb[0].mxu0
        %v501 = vadd.f32 0.0, %v500
        %v502 = vpop.f32.mrb[0].mxu0
        %503 = vdwg.mxu0
        %v504 = vld [vmem:[#allocation8] sm:$0xff]
        %v505 = vld [vmem:[#allocation8 + $0x8] sm:$0xff]
        %v506 = vld [vmem:[#allocation8 + $0x10] sm:$0xff]
        %v507 = vld [vmem:[#allocation8 + $0x18] sm:$0xff]
        %508 = vmatprep.subr.mxu0 0.0
        %509 = vmatpush1.msra.mxu0 %v504
        %510 = vmatprep.subr.mxu0 0.0
        %511 = vmatpush1.msra.mxu0 %v505
        %512 = vmatprep.subr.mxu0 0.0
        %513 = vmatpush1.msra.mxu0 %v506
        %514 = vmatprep.subr.mxu0 0.0
        %515 = vmatpush1.msra.mxu0 %v507
        %516 = vmatprep.subr.mxu0 0.0
        %517 = vmatpush1.msra.mxu0 0.0
        %518 = vmatprep.subr.mxu0 0.0
        %519 = vmatpush1.msra.mxu0 0.0
        %520 = vmatprep.subr.mxu0 0.0
        %521 = vmatpush1.msra.mxu0 0.0
        %522 = vmatprep.subr.mxu0 0.0
        %523 = vmatpush1.msra.mxu0 0.0
        %524 = vmatprep.subr.mxu0 0.0
        %525 = vmatpush1.msra.mxu0 0.0
        %526 = vmatprep.subr.mxu0 0.0
        %527 = vmatpush1.msra.mxu0 0.0
        %528 = vmatprep.subr.mxu0 0.0
        %529 = vmatpush1.msra.mxu0 0.0
        %530 = vmatprep.subr.mxu0 0.0
        %531 = vmatpush1.msra.mxu0 0.0
        %532 = vmatprep.subr.mxu0 0.0
        %533 = vmatpush1.msra.mxu0 0.0
        %534 = vmatprep.subr.mxu0 0.0
        %535 = vmatpush1.msra.mxu0 0.0
        %536 = vmatprep.subr.mxu0 0.0
        %537 = vmatpush1.msra.mxu0 0.0
        %538 = vmatprep.subr.mxu0 0.0
        %539 = vmatpush1.msra.mxu0 0.0
        %540 = vmatprep.subr.mxu0 0.0
        %541 = vmatpush1.msra.mxu0 0.0
        %542 = vmatprep.subr.mxu0 0.0
        %543 = vmatpush1.msra.mxu0 0.0
        %544 = vmatprep.subr.mxu0 0.0
        %545 = vmatpush1.msra.mxu0 0.0
        %546 = vmatprep.subr.mxu0 0.0
        %547 = vmatpush1.msra.mxu0 0.0
        %548 = vmatprep.subr.mxu0 0.0
        %549 = vmatpush1.msra.mxu0 0.0
        %550 = vmatprep.subr.mxu0 0.0
        %551 = vmatpush1.msra.mxu0 0.0
        %552 = vmatprep.subr.mxu0 0.0
        %553 = vmatpush1.msra.mxu0 0.0
        %554 = vmatprep.subr.mxu0 0.0
        %555 = vmatpush1.msra.mxu0 0.0
        %556 = vmatprep.subr.mxu0 0.0
        %557 = vmatpush1.msra.mxu0 0.0
        %558 = vmatprep.subr.mxu0 0.0
        %559 = vmatpush1.msra.mxu0 0.0
        %560 = vmatprep.subr.mxu0 0.0
        %561 = vmatpush1.msra.mxu0 0.0
        %562 = vmatprep.subr.mxu0 0.0
        %563 = vmatpush1.msra.mxu0 0.0
        %564 = vmatprep.subr.mxu0 0.0
        %565 = vmatpush1.msra.mxu0 0.0
        %566 = vmatprep.subr.mxu0 0.0
        %567 = vmatpush1.msra.mxu0 0.0
        %568 = vmatprep.subr.mxu0 0.0
        %569 = vmatpush1.msra.mxu0 0.0
        %570 = vmatprep.subr.mxu0 0.0
        %571 = vmatpush1.msra.mxu0 0.0
        %572 = vmatprep.mubr.f32.mxu0 0.0
        %573 = vmatmul.mubr.f32.gmra.mrb[0].mxu0 %v357
        %v574 = vpop.f32.mrb[0].mxu0
        %v575 = vadd.f32 0.0, %v574
        %v576 = vpop.f32.mrb[0].mxu0
        %577 = vdwg.mxu0
        %vm578 = vcmask 64512
        %579 = vst.msk [vmem:[%s335] sm:$0xff] %vm578, %v429
        %580 = vst.msk [vmem:[%s342] sm:$0xff] %vm578, %v501
        %581 = vst.msk [vmem:[%s349] sm:$0xff] %vm578, %v575
        %583 = vrot.lane.b32.xlu0 %v429, 120
        %v584 = vpop.permute.xlu0 %583
        %s586 = scalar_lea.vmem %s335, 8 [#allocation10]
        %587 = vst.msk [vmem:[%s586] sm:$0xff] %vm578, %v584
        %589 = vrot.lane.b32.xlu0 %v501, 120
        %v590 = vpop.permute.xlu0 %589
        %s592 = scalar_lea.vmem %s342, 8 [#allocation11]
        %593 = vst.msk [vmem:[%s592] sm:$0xff] %vm578, %v590
        %595 = vrot.lane.b32.xlu0 %v575, 120
        %v596 = vpop.permute.xlu0 %595
        %s598 = scalar_lea.vmem %s349, 8 [#allocation13]
        %599 = vst.msk [vmem:[%s598] sm:$0xff] %vm578, %v596
        %600 = vrot.lane.b32.xlu0 %v429, 112
        %v601 = vpop.permute.xlu0 %600
        %s603 = scalar_lea.vmem %s335, 16 [#allocation10]
        %604 = vst.msk [vmem:[%s603] sm:$0xff] %vm578, %v601
        %605 = vrot.lane.b32.xlu0 %v501, 112
        %v606 = vpop.permute.xlu0 %605
        %s608 = scalar_lea.vmem %s342, 16 [#allocation11]
        %609 = vst.msk [vmem:[%s608] sm:$0xff] %vm578, %v606
        %610 = vrot.lane.b32.xlu0 %v575, 112
        %v611 = vpop.permute.xlu0 %610
        %s613 = scalar_lea.vmem %s349, 16 [#allocation13]
        %614 = vst.msk [vmem:[%s613] sm:$0xff] %vm578, %v611
        %615 = vrot.lane.b32.xlu0 %v429, 104
        %v616 = vpop.permute.xlu0 %615
        %s618 = scalar_lea.vmem %s335, 24 [#allocation10]
        %619 = vst.msk [vmem:[%s618] sm:$0xff] %vm578, %v616
        %620 = vrot.lane.b32.xlu0 %v501, 104
        %v621 = vpop.permute.xlu0 %620
        %s623 = scalar_lea.vmem %s342, 24 [#allocation11]
        %624 = vst.msk [vmem:[%s623] sm:$0xff] %vm578, %v621
        %625 = vrot.lane.b32.xlu0 %v575, 104
        %v626 = vpop.permute.xlu0 %625
        %s628 = scalar_lea.vmem %s349, 24 [#allocation13]
        %629 = vst.msk [vmem:[%s628] sm:$0xff] %vm578, %v626
        %s630 = sand.u32 %s142, 1
        %s631 = scalar_lea.sflag [#allocation4], %s630
        %s632 = sand.u32 %s142, 1
        %s633 = smul.addr %s632, 32
        %s634 = scalar_lea.vmem [#allocation10], %s633
        %s635 = sand.u32 %s29, 1
        %s636 = scalar_lea.sflag [#allocation12], %s635
        %s637 = sand.u32 %s170, 1
        %s638 = smul.addr %s637, 32
        %s639 = scalar_lea.vmem [#allocation11], %s638
        %s640 = sand.u32 %s29, 1
        %s641 = scalar_lea.sflag [#allocation12], %s640
        %s642 = sand.u32 %s198, 1
        %s643 = smul.addr %s642, 32
        %s644 = scalar_lea.vmem [#allocation13], %s643
        // Predicated region
        $region53: #{tpu_custom_call.1} parent=35 // pred_check
          %p645 = pneg %p152
        $region54: #{tpu_custom_call.1} parent=35 // pred_check_branch
          %647 = sbr.rel (%p645) target = $region56
        $region55: #{tpu_custom_call.1} parent=35 // pred_region
          %s649 = ssub.s32 512, 512
          %650 = vsyncadd %s631, %s649
          %s651 = smul.addr %s33, 4
          %s652 = sadd.s32 %s34, %s651
          %s653 = smul.addr %s652, 128
          %s654 = scalar_lea.hbm %s4, %s653
          %s655 = sshll.u32 %s634, 4
          %s656 = int_to_ptr.vmem [resolvable:$true] %s655
          %661 = dma.vmem_to_hbm [thread:$0]  %s656, 512, %s654, %s631, 128, 128, 8
        $region56: #{tpu_custom_call.1} parent=35 // pred_fallthru
          _
        // Predicated region
        $region57: #{tpu_custom_call.1} parent=35 // pred_check
          %p662 = pneg %p180
        $region58: #{tpu_custom_call.1} parent=35 // pred_check_branch
          %664 = sbr.rel (%p662) target = $region60
        $region59: #{tpu_custom_call.1} parent=35 // pred_region
          %s666 = ssub.s32 512, 512
          %667 = vsyncadd %s636, %s666
          %s668 = smul.addr %s33, 4
          %s669 = sadd.s32 %s34, %s668
          %s670 = smul.addr %s669, 128
          %s671 = scalar_lea.hbm %s5, %s670
          %s672 = sshll.u32 %s639, 4
          %s673 = int_to_ptr.vmem [resolvable:$true] %s672
          %678 = dma.vmem_to_hbm [thread:$0]  %s673, 512, %s671, %s636, 128, 128, 8
        $region60: #{tpu_custom_call.1} parent=35 // pred_fallthru
          _
        // Predicated region
        $region61: #{tpu_custom_call.1} parent=35 // pred_check
          %p679 = pneg %p208
        $region62: #{tpu_custom_call.1} parent=35 // pred_check_branch
          %681 = sbr.rel (%p679) target = $region64
        $region63: #{tpu_custom_call.1} parent=35 // pred_region
          %s683 = ssub.s32 512, 512
          %684 = vsyncadd %s641, %s683
          %s685 = smul.addr %s33, 4
          %s686 = sadd.s32 %s34, %s685
          %s687 = smul.addr %s686, 128
          %s688 = scalar_lea.hbm %s6, %s687
          %s689 = sshll.u32 %s644, 4
          %s690 = int_to_ptr.vmem [resolvable:$true] %s689
          %695 = dma.vmem_to_hbm [thread:$0]  %s690, 512, %s688, %s641, 128, 128, 8
        $region64: #{tpu_custom_call.1} parent=35 // pred_fallthru
          _
      $region36: #{tpu_custom_call.1} parent=5 // pred_fallthru
        _
      %p696 = scmp.le.s32.totalorder 2, %s24
      // Predicated region
      $region65: #{tpu_custom_call.1} parent=5 // pred_check
        %p697 = pneg %p696
      $region66: #{tpu_custom_call.1} parent=5 // pred_check_branch
        %699 = sbr.rel (%p697) target = $region68
      $region67: #{tpu_custom_call.1} parent=5 // pred_region
        %s700 = ssub.s32 %s24, 2
        // Predicated region
        $region69: #{tpu_custom_call.1} parent=67 // pred_check
          %p701 = pneg %p158
        $region70: #{tpu_custom_call.1} parent=67 // pred_check_branch
          %703 = sbr.rel (%p701) target = $region72
        $region71: #{tpu_custom_call.1} parent=67 // pred_region
          %s704 = sand.u32 %s143, 1
          %s705 = scalar_lea.sflag [#allocation4], %s704
          %s706 = sand.u32 %s143, 1
          %s707 = smul.addr %s706, 32
          %s708 = scalar_lea.vmem [#allocation10], %s707
          %709 = dma.done %s705, 512
        $region72: #{tpu_custom_call.1} parent=67 // pred_fallthru
          _
        // Predicated region
        $region73: #{tpu_custom_call.1} parent=67 // pred_check
          %p710 = pneg %p186
        $region74: #{tpu_custom_call.1} parent=67 // pred_check_branch
          %712 = sbr.rel (%p710) target = $region76
        $region75: #{tpu_custom_call.1} parent=67 // pred_region
          %s713 = sand.u32 %s30, 1
          %s714 = scalar_lea.sflag [#allocation12], %s713
          %s715 = sand.u32 %s171, 1
          %s716 = smul.addr %s715, 32
          %s717 = scalar_lea.vmem [#allocation11], %s716
          %718 = dma.done %s714, 512
        $region76: #{tpu_custom_call.1} parent=67 // pred_fallthru
          _
        // Predicated region
        $region77: #{tpu_custom_call.1} parent=67 // pred_check
          %p719 = pneg %p214
        $region78: #{tpu_custom_call.1} parent=67 // pred_check_branch
          %721 = sbr.rel (%p719) target = $region80
        $region79: #{tpu_custom_call.1} parent=67 // pred_region
          %s722 = sand.u32 %s30, 1
          %s723 = scalar_lea.sflag [#allocation12], %s722
          %s724 = sand.u32 %s199, 1
          %s725 = smul.addr %s724, 32
          %s726 = scalar_lea.vmem [#allocation13], %s725
          %727 = dma.done %s723, 512
        $region80: #{tpu_custom_call.1} parent=67 // pred_fallthru
          _
      $region68: #{tpu_custom_call.1} parent=5 // pred_fallthru
        _
    $region6: #{tpu_custom_call.1} parent=1 // loop_footer
      %s28 = sadd.s32 1, %s24
    $region7: #{tpu_custom_call.1} parent=1 // loop_footer_branch
      %23 = sbr.rel target = $region3
    $region8: #{tpu_custom_call.1} parent=1 // loop_exit
      _
    %728 = vsyncpa [#allocation3], 1
    %s729 = scalar_lea.sflag [#allocation3], 1
    %730 = vsyncpa %s729, 1
    %731 = vsyncpa [#allocation6], 1
    %732 = vsyncpa [#allocation9], 1
    %733 = vsyncpa [#allocation4], 1
    %s734 = scalar_lea.sflag [#allocation4], 1
    %735 = vsyncpa %s734, 1
    %736 = vsyncpa [#allocation12], 1
    %s737 = scalar_lea.sflag [#allocation12], 1
    %738 = vsyncpa %s737, 1

</llo_original>
